<compile_context>
chip_gen: v5e
topology: v5e:2x2
jax: 0.10.0
libtpu: 0.0.40
codegen_flags: <defaults>
</compile_context>

<pallas_src>
import jax
import jax.numpy as jnp
from jax.experimental import pallas as pl
from jax.experimental.pallas import tpu as pltpu


def _round_up(x, m):
    return ((x + m - 1) // m) * m


def _node_model_kernel(x_ref, eattr_ref, esrc_ref, batch_ref, u_ref,
                       w1x_ref, w1e_ref, w1u_ref, b1_ref, w2_ref, b2_ref,
                       out_ref, acc_ref):
    i = pl.program_id(0)            # node-tile index (parallel)
    k = pl.program_id(1)            # edge-tile index (reduction)
    nk = pl.num_programs(1)
    tile_n = x_ref.shape[0]
    tile_e = eattr_ref.shape[0]

    @pl.when(k == 0)
    def _init():
        acc_ref[...] = jnp.zeros_like(acc_ref)

    # ---- scatter-sum of this edge tile into this node tile (bf16 one-hot, MXU) ----
    node_ids = jax.lax.broadcasted_iota(jnp.int32, (tile_n, tile_e), 0) + i * tile_n
    assign = (node_ids == esrc_ref[...]).astype(jnp.bfloat16)       # [tn, te] one-hot
    # eattr column 0 is a ones column -> acc[:, 0] accumulates the edge counts,
    # folding the count reduction into the same MXU matmul.
    acc_ref[...] += jnp.dot(assign, eattr_ref[...],
                            preferred_element_type=jnp.float32)

    # ---- epilogue: mean, u[batch] gather, split-weight MLP, lane-dense store ----
    @pl.when(k == nk - 1)
    def _epilogue():
        acc = acc_ref[...]
        counts = acc[:, 0:1]                                         # [tn, 1]
        inv = pl.reciprocal(jnp.maximum(counts, 1.0), approx=True)   # EUP, off VALU path
        v_e = acc * inv   # count column becomes ~1.0; it hits a zero row of w1_e

        # u[batch] gather as a tiny exact one-hot matmul (epilogue-only).
        n_graphs_pad = u_ref.shape[0]                                # padded to mult of 8
        graph_ids = jax.lax.broadcasted_iota(jnp.int32, (tile_n, n_graphs_pad), 1)
        bsel = (graph_ids == batch_ref[...]).astype(jnp.float32)     # [tn, Bp]
        u_b = jnp.dot(bsel, u_ref[...], preferred_element_type=jnp.float32)

        # Split-weight formulation replaces cat([x, v_e, u_b], dim=1) @ w1.
        h = (jnp.dot(x_ref[...], w1x_ref[...], preferred_element_type=jnp.float32)
             + jnp.dot(v_e, w1e_ref[...], preferred_element_type=jnp.float32)
             + jnp.dot(u_b, w1u_ref[...], preferred_element_type=jnp.float32)
             + b1_ref[...])
        h = jnp.maximum(h, 0.0)                                      # ReLU
        out = jnp.dot(h, w2_ref[...], preferred_element_type=jnp.float32) + b2_ref[...]
        out_ref[...] = out.astype(out_ref.dtype)


def megnet_node_model(x, edge_index, edge_attr, u, batch, params,
                      *, max_tile_n=256, max_tile_e=1024):
    """x:[N,Fx] f32, edge_index:[2,E] i32, edge_attr:[E,Fe] f32, u:[B,Fu] f32, batch:[N] i32."""
    w1, b1, w2, b2 = params
    N, Fx = x.shape
    E, Fe = edge_attr.shape
    B, Fu = u.shape
    HID = w1.shape[1]
    FOUT = w2.shape[1]
    assert w1.shape[0] == Fx + Fe + Fu

    # Lane-dense padded feature widths (multiples of 128).
    FXP = _round_up(Fx, 128)
    FEP = _round_up(Fe + 1, 128)      # +1 for the counts column (column 0)
    FUP = _round_up(Fu, 128)
    HIDP = _round_up(HID, 128)
    FOUTP = _round_up(FOUT, 128)
    BP = _round_up(B, 8)              # graphs padded to a multiple of 8 (sublane dim)

    # Tile sizes bounded so VMEM stays a few MiB even for large graphs
    # (safe for v7x's 64 MiB physical VMEM).
    tile_n = min(max_tile_n, _round_up(N, 8))
    tile_e = min(max_tile_e, _round_up(E, 128))
    N_pad = _round_up(N, tile_n)
    E_pad = _round_up(E, tile_e)

    f32 = jnp.float32
    # Padded node features.
    x_p = jnp.zeros((N_pad, FXP), f32).at[:N, :Fx].set(x.astype(f32))
    # Edge features, bf16, with a leading ones column so counts ride the same matmul.
    eattr_p = jnp.zeros((E_pad, FEP), jnp.bfloat16)
    eattr_p = eattr_p.at[:E, 0].set(jnp.ones((E,), jnp.bfloat16))
    eattr_p = eattr_p.at[:E, 1:1 + Fe].set(edge_attr.astype(jnp.bfloat16))
    # Edge source indices; padded edges get -1 so they match no node.
    esrc_p = jnp.full((1, E_pad), -1, jnp.int32).at[0, :E].set(
        edge_index[0].astype(jnp.int32))
    # Per-node graph ids; padded nodes map to graph 0 (their rows are sliced off).
    batch_p = jnp.zeros((N_pad, 1), jnp.int32).at[:N, 0].set(batch.astype(jnp.int32))
    # Global features (kept f32; gather matmul is exact and epilogue-only).
    u_p = jnp.zeros((BP, FUP), f32).at[:B, :Fu].set(u.astype(f32))

    # Split + pad the first linear layer (removes the in-kernel concat).
    w1_x, w1_e, w1_u = w1[:Fx], w1[Fx:Fx + Fe], w1[Fx + Fe:]
    w1x_p = jnp.zeros((FXP, HIDP), f32).at[:Fx, :HID].set(w1_x)
    w1e_p = jnp.zeros((FEP, HIDP), f32).at[1:1 + Fe, :HID].set(w1_e)  # row 0 (counts) = 0
    w1u_p = jnp.zeros((FUP, HIDP), f32).at[:Fu, :HID].set(w1_u)
    b1_p = jnp.zeros((1, HIDP), f32).at[0, :HID].set(b1)
    w2_p = jnp.zeros((HIDP, FOUTP), f32).at[:HID, :FOUT].set(w2)
    b2_p = jnp.zeros((1, FOUTP), f32).at[0, :FOUT].set(b2)

    grid = (N_pad // tile_n, E_pad // tile_e)

    flops = int(2 * N_pad * E_pad * FEP                      # one-hot scatter matmul
                + 2 * N_pad * (FXP + FEP + FUP) * HIDP       # first linear (split)
                + 2 * N_pad * HIDP * FOUTP                   # second linear
                + 2 * N_pad * BP * FUP)                      # u gather
    bytes_accessed = int(4 * (x_p.size + esrc_p.size + batch_p.size + u_p.size
                              + w1x_p.size + w1e_p.size + w1u_p.size
                              + b1_p.size + w2_p.size + b2_p.size
                              + N_pad * FOUTP)
                         + 2 * eattr_p.size)

    grid_spec = pltpu.PrefetchScalarGridSpec(
        num_scalar_prefetch=0,
        grid=grid,
        in_specs=[
            pl.BlockSpec((tile_n, FXP), lambda i, k: (i, 0)),      # x
            pl.BlockSpec((tile_e, FEP), lambda i, k: (k, 0)),      # edge_attr(+ones)
            pl.BlockSpec((1, tile_e), lambda i, k: (0, k)),        # edge src ids
            pl.BlockSpec((tile_n, 1), lambda i, k: (i, 0)),        # batch ids
            pl.BlockSpec((BP, FUP), lambda i, k: (0, 0)),          # u
            pl.BlockSpec((FXP, HIDP), lambda i, k: (0, 0)),        # w1_x
            pl.BlockSpec((FEP, HIDP), lambda i, k: (0, 0)),        # w1_e
            pl.BlockSpec((FUP, HIDP), lambda i, k: (0, 0)),        # w1_u
            pl.BlockSpec((1, HIDP), lambda i, k: (0, 0)),          # b1
            pl.BlockSpec((HIDP, FOUTP), lambda i, k: (0, 0)),      # w2
            pl.BlockSpec((1, FOUTP), lambda i, k: (0, 0)),         # b2
        ],
        out_specs=pl.BlockSpec((tile_n, FOUTP), lambda i, k: (i, 0)),
        scratch_shapes=[pltpu.VMEM((tile_n, FEP), jnp.float32)],   # scatter accumulator
    )

    out_p = pl.pallas_call(
        _node_model_kernel,
        out_shape=jax.ShapeDtypeStruct((N_pad, FOUTP), jnp.float32),
        grid_spec=grid_spec,
        compiler_params=pltpu.CompilerParams(
            dimension_semantics=("parallel", "arbitrary"),
            vmem_limit_bytes=32 * 1024 * 1024),
        cost_estimate=pl.CostEstimate(flops=flops, transcendentals=N_pad,
                                      bytes_accessed=bytes_accessed),
    )(x_p, eattr_p, esrc_p, batch_p, u_p,
      w1x_p, w1e_p, w1u_p, b1_p, w2_p, b2_p)

    return out_p[:N, :FOUT]


def _reference(x, edge_index, edge_attr, u, batch, params):
    """Pure-JAX reference for semantics check (f32, PyTorch semantics)."""
    w1, b1, w2, b2 = params
    N = x.shape[0]
    src = edge_index[0]
    sums = jax.ops.segment_sum(edge_attr, src, num_segments=N)
    cnts = jax.ops.segment_sum(jnp.ones((edge_attr.shape[0],)), src, num_segments=N)
    v_e = sums / jnp.maximum(cnts, 1.0)[:, None]
    comb = jnp.concatenate([x, v_e, u[batch]], axis=1)
    h = jnp.maximum(comb @ w1 + b1, 0.0)
    return h @ w2 + b2


if __name__ == "__main__":
    # Small deterministic problem sizes (chosen to also exercise row padding).
    N, E, B = 12, 40, 3           # nodes, edges, graphs
    Fx, Fe, Fu = 16, 16, 16       # node / edge / global feature dims
    HID, FOUT = 32, 16            # FCNN hidden and output dims
    FIN = Fx + Fe + Fu

    key = jax.random.PRNGKey(0)
    k = jax.random.split(key, 8)
    x = jax.random.normal(k[0], (N, Fx), dtype=jnp.float32)
    edge_attr = jax.random.normal(k[1], (E, Fe), dtype=jnp.float32)
    u = jax.random.normal(k[2], (B, Fu), dtype=jnp.float32)
    edge_index = jax.random.randint(k[3], (2, E), 0, N, dtype=jnp.int32)
    batch = jnp.repeat(jnp.arange(B, dtype=jnp.int32), N // B)

    # Deterministic FCNN parameters (assumed Linear -> ReLU -> Linear).
    w1 = jax.random.normal(k[4], (FIN, HID), dtype=jnp.float32) / jnp.sqrt(FIN)
    b1 = jax.random.normal(k[5], (HID,), dtype=jnp.float32) * 0.01
    w2 = jax.random.normal(k[6], (HID, FOUT), dtype=jnp.float32) / jnp.sqrt(HID)
    b2 = jax.random.normal(k[7], (FOUT,), dtype=jnp.float32) * 0.01
    params = (w1, b1, w2, b2)

    out = megnet_node_model(x, edge_index, edge_attr, u, batch, params)
    out = jax.block_until_ready(out)

    ref = _reference(x, edge_index, edge_attr, u, batch, params)
    assert out.shape == (N, FOUT)
    # bf16 edge_attr on the MXU + approx reciprocal widen the tolerance vs. the
    # pure-f32 reference (the one-hot matrices themselves are exact in bf16).
    err = float(jnp.max(jnp.abs(out - ref)))
    assert jnp.allclose(out, ref, atol=5e-2, rtol=5e-2), err
    print("KERNEL_OK")
</pallas_src>

<mosaic_0001>
module attributes {stable_mosaic.version = 11 : i64} {
  func.func @_node_model_kernel(%arg0: i32, %arg1: i32, %arg2: memref<16x128xf32, #tpu.memory_space<vmem>>, %arg3: memref<128x128xbf16, #tpu.memory_space<vmem>>, %arg4: memref<1x128xi32, #tpu.memory_space<vmem>>, %arg5: memref<16x1xi32, #tpu.memory_space<vmem>>, %arg6: memref<8x128xf32, #tpu.memory_space<vmem>>, %arg7: memref<128x128xf32, #tpu.memory_space<vmem>>, %arg8: memref<128x128xf32, #tpu.memory_space<vmem>>, %arg9: memref<128x128xf32, #tpu.memory_space<vmem>>, %arg10: memref<1x128xf32, #tpu.memory_space<vmem>>, %arg11: memref<128x128xf32, #tpu.memory_space<vmem>>, %arg12: memref<1x128xf32, #tpu.memory_space<vmem>>, %arg13: memref<16x128xf32, #tpu.memory_space<vmem>>, %arg14: memref<16x128xf32, #tpu.memory_space<vmem>>) attributes {dimension_semantics = [#tpu.dimension_semantics<parallel>, #tpu.dimension_semantics<arbitrary>], iteration_bounds = array<i64: 1, 1>, scalar_prefetch = 0 : i64, scratch_operands = 1 : i64, tpu.core_type = #tpu.core_type<tc>, window_params = [{transform_indices = @transform_0, window_bounds = array<i64: 16, 128>}, {transform_indices = @transform_1, window_bounds = array<i64: 128, 128>}, {transform_indices = @transform_2, window_bounds = array<i64: 1, 128>}, {transform_indices = @transform_3, window_bounds = array<i64: 16, 1>}, {pipeline_mode = #tpu.pipeline_mode<synchronous>, transform_indices = @transform_4, window_bounds = array<i64: 8, 128>}, {pipeline_mode = #tpu.pipeline_mode<synchronous>, transform_indices = @transform_5, window_bounds = array<i64: 128, 128>}, {pipeline_mode = #tpu.pipeline_mode<synchronous>, transform_indices = @transform_6, window_bounds = array<i64: 128, 128>}, {pipeline_mode = #tpu.pipeline_mode<synchronous>, transform_indices = @transform_7, window_bounds = array<i64: 128, 128>}, {pipeline_mode = #tpu.pipeline_mode<synchronous>, transform_indices = @transform_8, window_bounds = array<i64: 1, 128>}, {pipeline_mode = #tpu.pipeline_mode<synchronous>, transform_indices = @transform_9, window_bounds = array<i64: 128, 128>}, {pipeline_mode = #tpu.pipeline_mode<synchronous>, transform_indices = @transform_10, window_bounds = array<i64: 1, 128>}, {transform_indices = @transform_11, window_bounds = array<i64: 16, 128>}]} {
    %c0_i32 = arith.constant 0 : i32
    %0 = arith.cmpi eq, %arg1, %c0_i32 : i32
    %1 = arith.extui %0 : i1 to i32
    %c0_i32_0 = arith.constant 0 : i32
    %2 = arith.cmpi ne, %1, %c0_i32_0 : i32
    scf.if %2 {
      %cst_10 = arith.constant 0.000000e+00 : f32
      %21 = vector.broadcast %cst_10 : f32 to vector<16x128xf32>
      %c0_11 = arith.constant 0 : index
      %c0_12 = arith.constant 0 : index
      %22 = vector.load %arg14[%c0_11, %c0_12] : memref<16x128xf32, #tpu.memory_space<vmem>>, vector<16x128xf32>
      tpu.vector_store %arg14[%c0_11, %c0_12], %21 {strides = array<i32>} : memref<16x128xf32, #tpu.memory_space<vmem>>, vector<16x128xf32>,
    } else {
    }
    %3 = tpu.iota {dimensions = array<i32: 0>} : vector<16x128xi32>
    %c16_i32 = arith.constant 16 : i32
    %4 = arith.muli %arg0, %c16_i32 : i32
    %5 = vector.broadcast %4 : i32 to vector<16x128xi32>
    %6 = arith.addi %3, %5 : vector<16x128xi32>
    %c0 = arith.constant 0 : index
    %c0_1 = arith.constant 0 : index
    %7 = vector.load %arg4[%c0, %c0_1] : memref<1x128xi32, #tpu.memory_space<vmem>>, vector<1x128xi32>
    %8 = vector.broadcast %7 : vector<1x128xi32> to vector<16x128xi32>
    %9 = arith.cmpi eq, %6, %8 : vector<16x128xi32>
    %10 = arith.extui %9 : vector<16x128xi1> to vector<16x128xi32>
    %11 = arith.sitofp %10 : vector<16x128xi32> to vector<16x128xf32>
    %12 = arith.truncf %11 : vector<16x128xf32> to vector<16x128xbf16>
    %c0_2 = arith.constant 0 : index
    %c0_3 = arith.constant 0 : index
    %13 = vector.load %arg14[%c0_2, %c0_3] : memref<16x128xf32, #tpu.memory_space<vmem>>, vector<16x128xf32>
    %c0_4 = arith.constant 0 : index
    %c0_5 = arith.constant 0 : index
    %14 = vector.load %arg3[%c0_4, %c0_5] : memref<128x128xbf16, #tpu.memory_space<vmem>>, vector<128x128xbf16>
    %cst = arith.constant dense<0.000000e+00> : vector<16x128xf32>
    %15 = tpu.matmul %12, %14, %cst {dimension_numbers = #tpu.dot_dimension_numbers<[1], [0], [0], [1], [0, 0, 1, 1], [], []>} : vector<16x128xbf16>, vector<128x128xbf16>, vector<16x128xf32> -> vector<16x128xf32>
    %16 = arith.addf %13, %15 : vector<16x128xf32>
    %c0_6 = arith.constant 0 : index
    %c0_7 = arith.constant 0 : index
    %17 = vector.load %arg14[%c0_6, %c0_7] : memref<16x128xf32, #tpu.memory_space<vmem>>, vector<16x128xf32>
    tpu.vector_store %arg14[%c0_6, %c0_7], %16 {strides = array<i32>} : memref<16x128xf32, #tpu.memory_space<vmem>>, vector<16x128xf32>,
    %c0_i32_8 = arith.constant 0 : i32
    %18 = arith.cmpi eq, %arg1, %c0_i32_8 : i32
    %19 = arith.extui %18 : i1 to i32
    %c0_i32_9 = arith.constant 0 : i32
    %20 = arith.cmpi ne, %19, %c0_i32_9 : i32
    scf.if %20 {
      %c0_10 = arith.constant 0 : index
      %c0_11 = arith.constant 0 : index
      %21 = vector.load %arg14[%c0_10, %c0_11] : memref<16x128xf32, #tpu.memory_space<vmem>>, vector<16x128xf32>
      %22 = vector.extract_strided_slice %21 {offsets = [0, 0], sizes = [16, 1], strides = [1, 1]} : vector<16x128xf32> to vector<16x1xf32>
      %cst_12 = arith.constant 1.000000e+00 : f32
      %23 = vector.broadcast %cst_12 : f32 to vector<16x1xf32>
      %24 = arith.maximumf %22, %23 : vector<16x1xf32>
      %25 = tpu.reciprocal %24 {approx = true} : vector<16x1xf32> -> vector<16x1xf32>
      %26 = vector.broadcast %25 : vector<16x1xf32> to vector<16x128xf32>
      %27 = arith.mulf %21, %26 : vector<16x128xf32>
      %28 = tpu.iota {dimensions = array<i32: 1>} : vector<16x8xi32>
      %c0_13 = arith.constant 0 : index
      %c0_14 = arith.constant 0 : index
      %29 = vector.load %arg5[%c0_13, %c0_14] : memref<16x1xi32, #tpu.memory_space<vmem>>, vector<16x1xi32>
      %30 = vector.broadcast %29 : vector<16x1xi32> to vector<16x8xi32>
      %31 = arith.cmpi eq, %28, %30 : vector<16x8xi32>
      %32 = arith.extui %31 : vector<16x8xi1> to vector<16x8xi32>
      %33 = arith.sitofp %32 : vector<16x8xi32> to vector<16x8xf32>
      %c0_15 = arith.constant 0 : index
      %c0_16 = arith.constant 0 : index
      %34 = vector.load %arg6[%c0_15, %c0_16] : memref<8x128xf32, #tpu.memory_space<vmem>>, vector<8x128xf32>
      %cst_17 = arith.constant dense<0.000000e+00> : vector<16x128xf32>
      %35 = tpu.matmul %33, %34, %cst_17 {dimension_numbers = #tpu.dot_dimension_numbers<[1], [0], [0], [1], [0, 0, 1, 1], [], []>} : vector<16x8xf32>, vector<8x128xf32>, vector<16x128xf32> -> vector<16x128xf32>
      %c0_18 = arith.constant 0 : index
      %c0_19 = arith.constant 0 : index
      %36 = vector.load %arg2[%c0_18, %c0_19] : memref<16x128xf32, #tpu.memory_space<vmem>>, vector<16x128xf32>
      %c0_20 = arith.constant 0 : index
      %c0_21 = arith.constant 0 : index
      %37 = vector.load %arg7[%c0_20, %c0_21] : memref<128x128xf32, #tpu.memory_space<vmem>>, vector<128x128xf32>
      %cst_22 = arith.constant dense<0.000000e+00> : vector<16x128xf32>
      %38 = tpu.matmul %36, %37, %cst_22 {dimension_numbers = #tpu.dot_dimension_numbers<[1], [0], [0], [1], [0, 0, 1, 1], [], []>} : vector<16x128xf32>, vector<128x128xf32>, vector<16x128xf32> -> vector<16x128xf32>
      %c0_23 = arith.constant 0 : index
      %c0_24 = arith.constant 0 : index
      %39 = vector.load %arg8[%c0_23, %c0_24] : memref<128x128xf32, #tpu.memory_space<vmem>>, vector<128x128xf32>
      %cst_25 = arith.constant dense<0.000000e+00> : vector<16x128xf32>
      %40 = tpu.matmul %27, %39, %cst_25 {dimension_numbers = #tpu.dot_dimension_numbers<[1], [0], [0], [1], [0, 0, 1, 1], [], []>} : vector<16x128xf32>, vector<128x128xf32>, vector<16x128xf32> -> vector<16x128xf32>
      %41 = arith.addf %38, %40 : vector<16x128xf32>
      %c0_26 = arith.constant 0 : index
      %c0_27 = arith.constant 0 : index
      %42 = vector.load %arg9[%c0_26, %c0_27] : memref<128x128xf32, #tpu.memory_space<vmem>>, vector<128x128xf32>
      %cst_28 = arith.constant dense<0.000000e+00> : vector<16x128xf32>
      %43 = tpu.matmul %35, %42, %cst_28 {dimension_numbers = #tpu.dot_dimension_numbers<[1], [0], [0], [1], [0, 0, 1, 1], [], []>} : vector<16x128xf32>, vector<128x128xf32>, vector<16x128xf32> -> vector<16x128xf32>
      %44 = arith.addf %41, %43 : vector<16x128xf32>
      %c0_29 = arith.constant 0 : index
      %c0_30 = arith.constant 0 : index
      %45 = vector.load %arg10[%c0_29, %c0_30] : memref<1x128xf32, #tpu.memory_space<vmem>>, vector<1x128xf32>
      %46 = vector.broadcast %45 : vector<1x128xf32> to vector<16x128xf32>
      %47 = arith.addf %44, %46 : vector<16x128xf32>
      %cst_31 = arith.constant 0.000000e+00 : f32
      %48 = vector.broadcast %cst_31 : f32 to vector<16x128xf32>
      %49 = arith.maximumf %47, %48 : vector<16x128xf32>
      %c0_32 = arith.constant 0 : index
      %c0_33 = arith.constant 0 : index
      %50 = vector.load %arg11[%c0_32, %c0_33] : memref<128x128xf32, #tpu.memory_space<vmem>>, vector<128x128xf32>
      %cst_34 = arith.constant dense<0.000000e+00> : vector<16x128xf32>
      %51 = tpu.matmul %49, %50, %cst_34 {dimension_numbers = #tpu.dot_dimension_numbers<[1], [0], [0], [1], [0, 0, 1, 1], [], []>} : vector<16x128xf32>, vector<128x128xf32>, vector<16x128xf32> -> vector<16x128xf32>
      %c0_35 = arith.constant 0 : index
      %c0_36 = arith.constant 0 : index
      %52 = vector.load %arg12[%c0_35, %c0_36] : memref<1x128xf32, #tpu.memory_space<vmem>>, vector<1x128xf32>
      %53 = vector.broadcast %52 : vector<1x128xf32> to vector<16x128xf32>
      %54 = arith.addf %51, %53 : vector<16x128xf32>
      %c0_37 = arith.constant 0 : index
      %c0_38 = arith.constant 0 : index
      %55 = vector.load %arg13[%c0_37, %c0_38] : memref<16x128xf32, #tpu.memory_space<vmem>>, vector<16x128xf32>
      tpu.vector_store %arg13[%c0_37, %c0_38], %54 {strides = array<i32>} : memref<16x128xf32, #tpu.memory_space<vmem>>, vector<16x128xf32>,
    } else {
    }
    return
  }
  func.func @transform_0(%arg0: i32, %arg1: i32) -> (i32, i32) {
    %c0_i32 = arith.constant 0 : i32
    %c0_i32_0 = arith.constant 0 : i32
    return %arg0, %c0_i32 : i32, i32
  }
  func.func @transform_1(%arg0: i32, %arg1: i32) -> (i32, i32) {
    %c0_i32 = arith.constant 0 : i32
    %c0_i32_0 = arith.constant 0 : i32
    return %arg1, %c0_i32 : i32, i32
  }
  func.func @transform_2(%arg0: i32, %arg1: i32) -> (i32, i32) {
    %c0_i32 = arith.constant 0 : i32
    %c0_i32_0 = arith.constant 0 : i32
    return %c0_i32, %arg1 : i32, i32
  }
  func.func @transform_3(%arg0: i32, %arg1: i32) -> (i32, i32) {
    %c0_i32 = arith.constant 0 : i32
    %c0_i32_0 = arith.constant 0 : i32
    return %arg0, %c0_i32 : i32, i32
  }
  func.func @transform_4(%arg0: i32, %arg1: i32) -> (i32, i32) {
    %c0_i32 = arith.constant 0 : i32
    %c0_i32_0 = arith.constant 0 : i32
    %c0_i32_1 = arith.constant 0 : i32
    return %c0_i32, %c0_i32_0 : i32, i32
  }
  func.func @transform_5(%arg0: i32, %arg1: i32) -> (i32, i32) {
    %c0_i32 = arith.constant 0 : i32
    %c0_i32_0 = arith.constant 0 : i32
    %c0_i32_1 = arith.constant 0 : i32
    return %c0_i32, %c0_i32_0 : i32, i32
  }
  func.func @transform_6(%arg0: i32, %arg1: i32) -> (i32, i32) {
    %c0_i32 = arith.constant 0 : i32
    %c0_i32_0 = arith.constant 0 : i32
    %c0_i32_1 = arith.constant 0 : i32
    return %c0_i32, %c0_i32_0 : i32, i32
  }
  func.func @transform_7(%arg0: i32, %arg1: i32) -> (i32, i32) {
    %c0_i32 = arith.constant 0 : i32
    %c0_i32_0 = arith.constant 0 : i32
    %c0_i32_1 = arith.constant 0 : i32
    return %c0_i32, %c0_i32_0 : i32, i32
  }
  func.func @transform_8(%arg0: i32, %arg1: i32) -> (i32, i32) {
    %c0_i32 = arith.constant 0 : i32
    %c0_i32_0 = arith.constant 0 : i32
    %c0_i32_1 = arith.constant 0 : i32
    return %c0_i32, %c0_i32_0 : i32, i32
  }
  func.func @transform_9(%arg0: i32, %arg1: i32) -> (i32, i32) {
    %c0_i32 = arith.constant 0 : i32
    %c0_i32_0 = arith.constant 0 : i32
    %c0_i32_1 = arith.constant 0 : i32
    return %c0_i32, %c0_i32_0 : i32, i32
  }
  func.func @transform_10(%arg0: i32, %arg1: i32) -> (i32, i32) {
    %c0_i32 = arith.constant 0 : i32
    %c0_i32_0 = arith.constant 0 : i32
    %c0_i32_1 = arith.constant 0 : i32
    return %c0_i32, %c0_i32_0 : i32, i32
  }
  func.func @transform_11(%arg0: i32, %arg1: i32) -> (i32, i32) {
    %c0_i32 = arith.constant 0 : i32
    %c0_i32_0 = arith.constant 0 : i32
    return %arg0, %c0_i32 : i32, i32
  }
}

</mosaic_0001>

<llo_original>
// kernel: tpu_custom_call.1
$region0: #{tpu_custom_call.1}
  #allocation0 [shape = 'u32[]', space=smem, size = 0x4, offset = 0x4, fixed_abs, tag = 'smem constant byte address 0x4 - core index']
  #allocation1 [shape = 'u32[72,128]{1,0:T(1,128)}', space=vmem, size = 0x9000, scoped, tag = 'internal scratch']
  #allocation2 [shape = 'f32[16,128]{1,0:T(8,128)}', space=vmem, size = 0x2000, scoped, tag = 'scratch operand']
  %s0 = inlined_call_operand.vmem [shape: f32[16,128], index: 0, kind: input, shape index: {}]
  %s1 = inlined_call_operand.hbm [shape: bf16[128,128], index: 1, kind: input, shape index: {}]
  %s2 = inlined_call_operand.vmem [shape: s32[1,128], index: 2, kind: input, shape index: {}]
  %s3 = inlined_call_operand.vmem [shape: s32[16,1], index: 3, kind: input, shape index: {}]
  %s4 = inlined_call_operand.hbm [shape: f32[8,128], index: 4, kind: input, shape index: {}]
  %s5 = inlined_call_operand.hbm [shape: f32[128,128], index: 5, kind: input, shape index: {}]
  %s6 = inlined_call_operand.hbm [shape: f32[128,128], index: 6, kind: input, shape index: {}]
  %s7 = inlined_call_operand.hbm [shape: f32[128,128], index: 7, kind: input, shape index: {}]
  %s8 = inlined_call_operand.vmem [shape: f32[1,128], index: 8, kind: input, shape index: {}]
  %s9 = inlined_call_operand.hbm [shape: f32[128,128], index: 9, kind: input, shape index: {}]
  %s10 = inlined_call_operand.vmem [shape: f32[1,128], index: 10, kind: input, shape index: {}]
  %s11 = inlined_call_operand.hbm [shape: f32[16,128], index: 11, kind: output, shape index: {}]
  %s12 = sld [smem:[#allocation0]]
  $region86: #{tpu_custom_call.1} parent=0
    _
  %s14 = ssub.s32 1, %s12
  %s15 = scalar_select 0, %s14, %s12
  $region1: #{tpu_custom_call.1} parent=0
    #allocation3 [shape = 'u8[32768]{0}', space=vmem, size = 0x8000, scoped, tag = 'input window, operand 1, single buffered']
    #allocation4 [shape = 's32[1]{0}', space=sflag, size = 0x4, scoped, tag = 'scoped memory for tpu_custom_call.1']
    #allocation5 [shape = 's32[1]{0}', space=sflag, size = 0x4, scoped, tag = 'scoped memory for tpu_custom_call.1']
    #allocation6 [shape = 'u8[4096]{0}', space=vmem, size = 0x1000, scoped, tag = 'input window, operand 4, single buffered']
    #allocation7 [shape = 's32[1]{0}', space=sflag, size = 0x4, scoped, tag = 'scoped memory for tpu_custom_call.1']
    #allocation8 [shape = 'u8[65536]{0}', space=vmem, size = 0x10000, scoped, tag = 'input window, operand 5, single buffered']
    #allocation9 [shape = 'u8[65536]{0}', space=vmem, size = 0x10000, scoped, tag = 'input window, operand 6, single buffered']
    #allocation10 [shape = 's32[1]{0}', space=sflag, size = 0x4, scoped, tag = 'scoped memory for tpu_custom_call.1']
    #allocation11 [shape = 'u8[65536]{0}', space=vmem, size = 0x10000, scoped, tag = 'input window, operand 7, single buffered']
    #allocation12 [shape = 'u8[65536]{0}', space=vmem, size = 0x10000, scoped, tag = 'input window, operand 9, single buffered']
    #allocation13 [shape = 's32[1]{0}', space=sflag, size = 0x4, scoped, tag = 'scoped memory for tpu_custom_call.1']
    #allocation14 [shape = 'u8[8192]{0}', space=vmem, size = 0x2000, scoped, tag = 'output window, operand 0, single buffered']
    %16 = vsyncpa [#allocation4], 0
    %17 = vsyncpa [#allocation7], 0
    %18 = vsyncpa [#allocation10], 0
    %19 = vsyncpa [#allocation13], 0
    %20 = vsyncpa [#allocation5], 0
    // Predicated region
    $region2: #{tpu_custom_call.1} parent=1 // pred_check
      _
    $region3: #{tpu_custom_call.1} parent=1 // pred_check_branch
      %22 = sbr.rel (0) target = $region5
    $region4: #{tpu_custom_call.1} parent=1 // pred_region
      _
    $region5: #{tpu_custom_call.1} parent=1 // pred_fallthru
      _
    // Predicated region
    $region6: #{tpu_custom_call.1} parent=1 // pred_check
      _
    $region7: #{tpu_custom_call.1} parent=1 // pred_check_branch
      %24 = sbr.rel (0) target = $region9
    $region8: #{tpu_custom_call.1} parent=1 // pred_region
      %26 = vsyncadd [#allocation4], 0
      %s27 = sshll.u32 %s1, 4
      %s28 = int_to_ptr.hbm [resolvable:$true] %s27
      %s29 = sshll.u32 [#allocation3], 4
      %s30 = int_to_ptr.vmem [resolvable:$true] %s29
      %35 = dma.hbm_to_vmem [thread:$0]  %s28, 1024, %s30, [#allocation4], 64, 64, 4
    $region9: #{tpu_custom_call.1} parent=1 // pred_fallthru
      _
    // Predicated region
    $region10: #{tpu_custom_call.1} parent=1 // pred_check
      _
    $region11: #{tpu_custom_call.1} parent=1 // pred_check_branch
      %37 = sbr.rel (0) target = $region13
    $region12: #{tpu_custom_call.1} parent=1 // pred_region
      _
    $region13: #{tpu_custom_call.1} parent=1 // pred_fallthru
      _
    // Predicated region
    $region14: #{tpu_custom_call.1} parent=1 // pred_check
      _
    $region15: #{tpu_custom_call.1} parent=1 // pred_check_branch
      %39 = sbr.rel (0) target = $region17
    $region16: #{tpu_custom_call.1} parent=1 // pred_region
      _
    $region17: #{tpu_custom_call.1} parent=1 // pred_fallthru
      _
    // Predicated region
    $region18: #{tpu_custom_call.1} parent=1 // pred_check
      _
    $region19: #{tpu_custom_call.1} parent=1 // pred_check_branch
      %41 = sbr.rel (0) target = $region21
    $region20: #{tpu_custom_call.1} parent=1 // pred_region
      %43 = vsyncadd [#allocation7], 0
      %s45 = sshll.u32 %s4, 4
      %s46 = int_to_ptr.hbm [resolvable:$true] %s45
      %s47 = sshll.u32 [#allocation6], 4
      %s48 = int_to_ptr.vmem [resolvable:$true] %s47
      %50 = dma.hbm_to_vmem [thread:$0]  %s46, 128, %s48, [#allocation7]
    $region21: #{tpu_custom_call.1} parent=1 // pred_fallthru
      _
    // Predicated region
    $region22: #{tpu_custom_call.1} parent=1 // pred_check
      _
    $region23: #{tpu_custom_call.1} parent=1 // pred_check_branch
      %52 = sbr.rel (0) target = $region25
    $region24: #{tpu_custom_call.1} parent=1 // pred_region
      %54 = vsyncadd [#allocation7], 0
      %s55 = sshll.u32 %s5, 4
      %s56 = int_to_ptr.hbm [resolvable:$true] %s55
      %s57 = sshll.u32 [#allocation8], 4
      %s58 = int_to_ptr.vmem [resolvable:$true] %s57
      %63 = dma.hbm_to_vmem [thread:$0]  %s56, 2048, %s58, [#allocation7], 128, 128, 8
    $region25: #{tpu_custom_call.1} parent=1 // pred_fallthru
      _
    // Predicated region
    $region26: #{tpu_custom_call.1} parent=1 // pred_check
      _
    $region27: #{tpu_custom_call.1} parent=1 // pred_check_branch
      %65 = sbr.rel (0) target = $region29
    $region28: #{tpu_custom_call.1} parent=1 // pred_region
      %67 = vsyncadd [#allocation10], 0
      %s68 = sshll.u32 %s6, 4
      %s69 = int_to_ptr.hbm [resolvable:$true] %s68
      %s70 = sshll.u32 [#allocation9], 4
      %s71 = int_to_ptr.vmem [resolvable:$true] %s70
      %76 = dma.hbm_to_vmem [thread:$0]  %s69, 2048, %s71, [#allocation10], 128, 128, 8
    $region29: #{tpu_custom_call.1} parent=1 // pred_fallthru
      _
    // Predicated region
    $region30: #{tpu_custom_call.1} parent=1 // pred_check
      _
    $region31: #{tpu_custom_call.1} parent=1 // pred_check_branch
      %78 = sbr.rel (0) target = $region33
    $region32: #{tpu_custom_call.1} parent=1 // pred_region
      %80 = vsyncadd [#allocation10], 0
      %s81 = sshll.u32 %s7, 4
      %s82 = int_to_ptr.hbm [resolvable:$true] %s81
      %s83 = sshll.u32 [#allocation11], 4
      %s84 = int_to_ptr.vmem [resolvable:$true] %s83
      %89 = dma.hbm_to_vmem [thread:$0]  %s82, 2048, %s84, [#allocation10], 128, 128, 8
    $region33: #{tpu_custom_call.1} parent=1 // pred_fallthru
      _
    // Predicated region
    $region34: #{tpu_custom_call.1} parent=1 // pred_check
      _
    $region35: #{tpu_custom_call.1} parent=1 // pred_check_branch
      %91 = sbr.rel (0) target = $region37
    $region36: #{tpu_custom_call.1} parent=1 // pred_region
      _
    $region37: #{tpu_custom_call.1} parent=1 // pred_fallthru
      _
    // Predicated region
    $region38: #{tpu_custom_call.1} parent=1 // pred_check
      _
    $region39: #{tpu_custom_call.1} parent=1 // pred_check_branch
      %93 = sbr.rel (0) target = $region41
    $region40: #{tpu_custom_call.1} parent=1 // pred_region
      %95 = vsyncadd [#allocation13], 0
      %s96 = sshll.u32 %s9, 4
      %s97 = int_to_ptr.hbm [resolvable:$true] %s96
      %s98 = sshll.u32 [#allocation12], 4
      %s99 = int_to_ptr.vmem [resolvable:$true] %s98
      %104 = dma.hbm_to_vmem [thread:$0]  %s97, 2048, %s99, [#allocation13], 128, 128, 8
    $region41: #{tpu_custom_call.1} parent=1 // pred_fallthru
      _
    // Predicated region
    $region42: #{tpu_custom_call.1} parent=1 // pred_check
      _
    $region43: #{tpu_custom_call.1} parent=1 // pred_check_branch
      %106 = sbr.rel (0) target = $region45
    $region44: #{tpu_custom_call.1} parent=1 // pred_region
      _
    $region45: #{tpu_custom_call.1} parent=1 // pred_fallthru
      _
    // Predicated region
    $region46: #{tpu_custom_call.1} parent=1 // pred_check
      _
    $region47: #{tpu_custom_call.1} parent=1 // pred_check_branch
      %108 = sbr.rel (0) target = $region49
    $region48: #{tpu_custom_call.1} parent=1 // pred_region
      %110 = dma.done [#allocation4], 1024
    $region49: #{tpu_custom_call.1} parent=1 // pred_fallthru
      _
    // Predicated region
    $region50: #{tpu_custom_call.1} parent=1 // pred_check
      _
    $region51: #{tpu_custom_call.1} parent=1 // pred_check_branch
      %112 = sbr.rel (0) target = $region53
    $region52: #{tpu_custom_call.1} parent=1 // pred_region
      %114 = dma.done [#allocation7], 128
    $region53: #{tpu_custom_call.1} parent=1 // pred_fallthru
      _
    // Predicated region
    $region54: #{tpu_custom_call.1} parent=1 // pred_check
      _
    $region55: #{tpu_custom_call.1} parent=1 // pred_check_branch
      %116 = sbr.rel (0) target = $region57
    $region56: #{tpu_custom_call.1} parent=1 // pred_region
      %118 = dma.done [#allocation7], 2048
    $region57: #{tpu_custom_call.1} parent=1 // pred_fallthru
      _
    // Predicated region
    $region58: #{tpu_custom_call.1} parent=1 // pred_check
      _
    $region59: #{tpu_custom_call.1} parent=1 // pred_check_branch
      %120 = sbr.rel (0) target = $region61
    $region60: #{tpu_custom_call.1} parent=1 // pred_region
      %122 = dma.done [#allocation10], 2048
    $region61: #{tpu_custom_call.1} parent=1 // pred_fallthru
      _
    // Predicated region
    $region62: #{tpu_custom_call.1} parent=1 // pred_check
      _
    $region63: #{tpu_custom_call.1} parent=1 // pred_check_branch
      %124 = sbr.rel (0) target = $region65
    $region64: #{tpu_custom_call.1} parent=1 // pred_region
      %126 = dma.done [#allocation10], 2048
    $region65: #{tpu_custom_call.1} parent=1 // pred_fallthru
      _
    // Predicated region
    $region66: #{tpu_custom_call.1} parent=1 // pred_check
      _
    $region67: #{tpu_custom_call.1} parent=1 // pred_check_branch
      %128 = sbr.rel (0) target = $region69
    $region68: #{tpu_custom_call.1} parent=1 // pred_region
      %130 = dma.done [#allocation13], 2048
    $region69: #{tpu_custom_call.1} parent=1 // pred_fallthru
      _
    %p131 = scmp.eq.s32.totalorder 0, 0
    // Predicated region
    $region70: #{tpu_custom_call.1} parent=1 // pred_check
      %p132 = pneg %p131
    $region71: #{tpu_custom_call.1} parent=1 // pred_check_branch
      %134 = sbr.rel (%p132) target = $region73
    $region72: #{tpu_custom_call.1} parent=1 // pred_region
      %135 = vst [vmem:[#allocation2] sm:$0xff] 0.0
      %136 = vst [vmem:[#allocation2 + $0x8] sm:$0xff] 0.0
    $region73: #{tpu_custom_call.1} parent=1 // pred_fallthru
      _
    %v137 = vlaneseq
    %v138 = vshrl.u32 %v137, 7
    %v139 = vadd.s32 %v138, 8
    %s140 = smul.u32 0, 16
    %v141 = vstv %s140
    %v142 = vadd.s32 %v138, %v141
    %v143 = vadd.s32 %v139, %v141
    %v144 = vld [vmem:[%s2] sm:$0x1]
    %v145 = vperm.slane %v144, 0
    %vm146 = vcmp.eq.s32.totalorder %v142, %v145
    %vm147 = vcmp.eq.s32.totalorder %v143, %v145
    %v148 = vsel %vm146, 1, 0
    %v149 = vsel %vm147, 1, 0
    %v150 = vcvt.s32.f32 %v148
    %v151 = vcvt.s32.f32 %v149
    %v152 = vpack.c.bf16 %v151, %v150
    %v153 = vld [vmem:[#allocation2] sm:$0xff]
    %v154 = vld [vmem:[#allocation2 + $0x8] sm:$0xff]
    %v155 = vld [vmem:[#allocation3] sm:$0xf]
    %v156 = vld [vmem:[#allocation3 + $0x4] sm:$0xf]
    %v157 = vld [vmem:[#allocation3 + $0x8] sm:$0xf]
    %v158 = vld [vmem:[#allocation3 + $0xc] sm:$0xf]
    %v159 = vld [vmem:[#allocation3 + $0x10] sm:$0xf]
    %v160 = vld [vmem:[#allocation3 + $0x14] sm:$0xf]
    %v161 = vld [vmem:[#allocation3 + $0x18] sm:$0xf]
    %v162 = vld [vmem:[#allocation3 + $0x1c] sm:$0xf]
    %v163 = vld [vmem:[#allocation3 + $0x20] sm:$0xf]
    %v164 = vld [vmem:[#allocation3 + $0x24] sm:$0xf]
    %v165 = vld [vmem:[#allocation3 + $0x28] sm:$0xf]
    %v166 = vld [vmem:[#allocation3 + $0x2c] sm:$0xf]
    %v167 = vld [vmem:[#allocation3 + $0x30] sm:$0xf]
    %v168 = vld [vmem:[#allocation3 + $0x34] sm:$0xf]
    %v169 = vld [vmem:[#allocation3 + $0x38] sm:$0xf]
    %v170 = vld [vmem:[#allocation3 + $0x3c] sm:$0xf]
    %v187 = vunpack.c.l.b16 %v155
    %v188 = vunpack.c.l.b16 %v156
    %v189 = vunpack.c.l.b16 %v157
    %v190 = vunpack.c.l.b16 %v158
    %v191 = vunpack.c.l.b16 %v159
    %v192 = vunpack.c.l.b16 %v160
    %v193 = vunpack.c.l.b16 %v161
    %v194 = vunpack.c.l.b16 %v162
    %v195 = vunpack.c.l.b16 %v163
    %v196 = vunpack.c.l.b16 %v164
    %v197 = vunpack.c.l.b16 %v165
    %v198 = vunpack.c.l.b16 %v166
    %v199 = vunpack.c.l.b16 %v167
    %v200 = vunpack.c.l.b16 %v168
    %v201 = vunpack.c.l.b16 %v169
    %v202 = vunpack.c.l.b16 %v170
    %v203 = vpack.c.b16 %v188, %v187
    %v204 = vpack.c.b16 %v190, %v189
    %v205 = vpack.c.b16 %v192, %v191
    %v206 = vpack.c.b16 %v194, %v193
    %v207 = vpack.c.b16 %v196, %v195
    %v208 = vpack.c.b16 %v198, %v197
    %v209 = vpack.c.b16 %v200, %v199
    %v210 = vpack.c.b16 %v202, %v201
    %219 = vmatpush.bf16.msra.mxu0 %v210
    %220 = vmatpush.bf16.msra.mxu0 %v209
    %221 = vmatpush.bf16.msra.mxu0 %v208
    %222 = vmatpush.bf16.msra.mxu0 %v207
    %223 = vmatpush.bf16.msra.mxu0 %v206
    %224 = vmatpush.bf16.msra.mxu0 %v205
    %225 = vmatpush.bf16.msra.mxu0 %v204
    %226 = vmatpush.bf16.msra.mxu0 %v203
    %227 = vmatmul.bf16.gmra.mxu0 %v152
    %v228 = vpop.f32.mrf.mxu0
    %v229 = vadd.f32 0.0, %v228
    %v230 = vpop.f32.mrf.mxu0
    %v231 = vadd.f32 0.0, %v230
    %232 = vdwg.mxu0
    %v233 = vadd.f32 %v153, %v229
    %v234 = vadd.f32 %v154, %v231
    %235 = vst [vmem:[#allocation2] sm:$0xff] %v233
    %236 = vst [vmem:[#allocation2 + $0x8] sm:$0xff] %v234
    // Predicated region
    $region74: #{tpu_custom_call.1} parent=1 // pred_check
      %p237 = pneg %p131
    $region75: #{tpu_custom_call.1} parent=1 // pred_check_branch
      %239 = sbr.rel (%p237) target = $region77
    $region76: #{tpu_custom_call.1} parent=1 // pred_region
      %v240 = vld [vmem:[#allocation2] sm:$0xff]
      %v241 = vld [vmem:[#allocation2 + $0x8] sm:$0xff]
      %v242 = vmax.f32 %v240, 1.0
      %v243 = vmax.f32 %v241, 1.0
      %v244 = vrcp.pop %v242
      %v245 = vrcp.pop %v243
      %247 = vset.pattern.permute.xlu0 0
      %248 = vperm.xlu0 %247, %v244
      %v249 = vpop.permute.xlu0 %248
      %252 = vset.pattern.permute.xlu0 0
      %253 = vperm.xlu0 %252, %v245
      %v254 = vpop.permute.xlu0 %253
      %v256 = vmul.f32 %v240, %v249
      %v257 = vmul.f32 %v241, %v254
      %v258 = vlaneseq
      %v259 = vand.u32 %v258, 127
      %v260 = vld [vmem:[%s3] sm:$0xff]
      %v261 = vld [vmem:[%s3 + $0x8] sm:$0xff]
      %262 = vset.pattern.permute.xlu0 0
      %263 = vperm.xlu0 %262, %v260
      %v264 = vpop.permute.xlu0 %263
      %265 = vset.pattern.permute.xlu0 0
      %266 = vperm.xlu0 %265, %v261
      %v267 = vpop.permute.xlu0 %266
      %vm268 = vcmp.eq.s32.totalorder %v259, %v264
      %vm269 = vcmp.eq.s32.totalorder %v259, %v267
      %v270 = vsel %vm268, 1, 0
      %v271 = vsel %vm269, 1, 0
      %v272 = vcvt.s32.f32 %v270
      %v273 = vcvt.s32.f32 %v271
      %v274 = vld [vmem:[#allocation6] sm:$0xff]
      %vm275 = vcmask 64512
      %v277 = vsel %vm275, %v272, 0
      %v280 = vsel %vm275, %v273, 0
      %282 = vmatpush.msra.mxu0 0.0
      %283 = vmatpush.msra.mxu0 0.0
      %284 = vmatpush.msra.mxu0 0.0
      %285 = vmatpush.msra.mxu0 0.0
      %286 = vmatpush.msra.mxu0 0.0
      %287 = vmatpush.msra.mxu0 0.0
      %288 = vmatpush.msra.mxu0 0.0
      %289 = vmatpush.msra.mxu0 0.0
      %290 = vmatpush.msra.mxu0 0.0
      %291 = vmatpush.msra.mxu0 0.0
      %292 = vmatpush.msra.mxu0 0.0
      %293 = vmatpush.msra.mxu0 0.0
      %294 = vmatpush.msra.mxu0 0.0
      %295 = vmatpush.msra.mxu0 0.0
      %296 = vmatpush.msra.mxu0 0.0
      %297 = vmatpush.msra.mxu0 %v274
      %298 = vmatmul.f32.gmra.mxu0 %v277
      %v299 = vpop.f32.mrf.mxu0
      %v300 = vadd.f32 0.0, %v299
      %301 = vmatmul.f32.gmra.mxu0 %v280
      %v302 = vpop.f32.mrf.mxu0
      %v303 = vadd.f32 0.0, %v302
      %304 = vdwg.mxu0
      %v305 = vld [vmem:[%s0] sm:$0xff]
      %v306 = vld [vmem:[%s0 + $0x8] sm:$0xff]
      %v307 = vld [vmem:[#allocation8] sm:$0xff]
      %v308 = vld [vmem:[#allocation8 + $0x8] sm:$0xff]
      %v309 = vld [vmem:[#allocation8 + $0x10] sm:$0xff]
      %v310 = vld [vmem:[#allocation8 + $0x18] sm:$0xff]
      %v311 = vld [vmem:[#allocation8 + $0x20] sm:$0xff]
      %v312 = vld [vmem:[#allocation8 + $0x28] sm:$0xff]
      %v313 = vld [vmem:[#allocation8 + $0x30] sm:$0xff]
      %v314 = vld [vmem:[#allocation8 + $0x38] sm:$0xff]
      %v315 = vld [vmem:[#allocation8 + $0x40] sm:$0xff]
      %v316 = vld [vmem:[#allocation8 + $0x48] sm:$0xff]
      %v317 = vld [vmem:[#allocation8 + $0x50] sm:$0xff]
      %v318 = vld [vmem:[#allocation8 + $0x58] sm:$0xff]
      %v319 = vld [vmem:[#allocation8 + $0x60] sm:$0xff]
      %v320 = vld [vmem:[#allocation8 + $0x68] sm:$0xff]
      %v321 = vld [vmem:[#allocation8 + $0x70] sm:$0xff]
      %v322 = vld [vmem:[#allocation8 + $0x78] sm:$0xff]
      %v323 = vld [vmem:[#allocation9] sm:$0xff]
      %v324 = vld [vmem:[#allocation9 + $0x8] sm:$0xff]
      %v325 = vld [vmem:[#allocation9 + $0x10] sm:$0xff]
      %v326 = vld [vmem:[#allocation9 + $0x18] sm:$0xff]
      %v327 = vld [vmem:[#allocation9 + $0x20] sm:$0xff]
      %v328 = vld [vmem:[#allocation9 + $0x28] sm:$0xff]
      %v329 = vld [vmem:[#allocation9 + $0x30] sm:$0xff]
      %v330 = vld [vmem:[#allocation9 + $0x38] sm:$0xff]
      %v331 = vld [vmem:[#allocation9 + $0x40] sm:$0xff]
      %v332 = vld [vmem:[#allocation9 + $0x48] sm:$0xff]
      %v333 = vld [vmem:[#allocation9 + $0x50] sm:$0xff]
      %v334 = vld [vmem:[#allocation9 + $0x58] sm:$0xff]
      %v335 = vld [vmem:[#allocation9 + $0x60] sm:$0xff]
      %v336 = vld [vmem:[#allocation9 + $0x68] sm:$0xff]
      %v337 = vld [vmem:[#allocation9 + $0x70] sm:$0xff]
      %v338 = vld [vmem:[#allocation9 + $0x78] sm:$0xff]
      %339 = vmatpush.msra.mxu0 %v338
      %340 = vmatpush.msra.mxu0 %v337
      %341 = vmatpush.msra.mxu0 %v336
      %342 = vmatpush.msra.mxu0 %v335
      %343 = vmatpush.msra.mxu0 %v334
      %344 = vmatpush.msra.mxu0 %v333
      %345 = vmatpush.msra.mxu0 %v332
      %346 = vmatpush.msra.mxu0 %v331
      %347 = vmatpush.msra.mxu0 %v330
      %348 = vmatpush.msra.mxu0 %v329
      %349 = vmatpush.msra.mxu0 %v328
      %350 = vmatpush.msra.mxu0 %v327
      %351 = vmatpush.msra.mxu0 %v326
      %352 = vmatpush.msra.mxu0 %v325
      %353 = vmatpush.msra.mxu0 %v324
      %354 = vmatpush.msra.mxu0 %v323
      %355 = vmatmul.f32.gmra.mxu0 %v256
      %v356 = vpop.f32.mrf.mxu0
      %v357 = vadd.f32 0.0, %v356
      %358 = vmatmul.f32.gmra.mxu0 %v257
      %v359 = vpop.f32.mrf.mxu0
      %v360 = vadd.f32 0.0, %v359
      %361 = vdwg.mxu0
      %362 = vmatpush.msra.mxu0 %v322
      %363 = vmatpush.msra.mxu0 %v321
      %364 = vmatpush.msra.mxu0 %v320
      %365 = vmatpush.msra.mxu0 %v319
      %366 = vmatpush.msra.mxu0 %v318
      %367 = vmatpush.msra.mxu0 %v317
      %368 = vmatpush.msra.mxu0 %v316
      %369 = vmatpush.msra.mxu0 %v315
      %370 = vmatpush.msra.mxu0 %v314
      %371 = vmatpush.msra.mxu0 %v313
      %372 = vmatpush.msra.mxu0 %v312
      %373 = vmatpush.msra.mxu0 %v311
      %374 = vmatpush.msra.mxu0 %v310
      %375 = vmatpush.msra.mxu0 %v309
      %376 = vmatpush.msra.mxu0 %v308
      %377 = vmatpush.msra.mxu0 %v307
      %378 = vmatmul.f32.gmra.mxu0 %v305
      %v379 = vpop.f32.mrf.mxu0
      %v380 = vadd.f32 %v357, %v379
      %381 = vmatmul.f32.gmra.mxu0 %v306
      %v382 = vpop.f32.mrf.mxu0
      %v383 = vadd.f32 %v360, %v382
      %384 = vdwg.mxu0
      %v385 = vld [vmem:[#allocation11] sm:$0xff]
      %v386 = vld [vmem:[#allocation11 + $0x8] sm:$0xff]
      %v387 = vld [vmem:[#allocation11 + $0x10] sm:$0xff]
      %v388 = vld [vmem:[#allocation11 + $0x18] sm:$0xff]
      %v389 = vld [vmem:[#allocation11 + $0x20] sm:$0xff]
      %v390 = vld [vmem:[#allocation11 + $0x28] sm:$0xff]
      %v391 = vld [vmem:[#allocation11 + $0x30] sm:$0xff]
      %v392 = vld [vmem:[#allocation11 + $0x38] sm:$0xff]
      %v393 = vld [vmem:[#allocation11 + $0x40] sm:$0xff]
      %v394 = vld [vmem:[#allocation11 + $0x48] sm:$0xff]
      %v395 = vld [vmem:[#allocation11 + $0x50] sm:$0xff]
      %v396 = vld [vmem:[#allocation11 + $0x58] sm:$0xff]
      %v397 = vld [vmem:[#allocation11 + $0x60] sm:$0xff]
      %v398 = vld [vmem:[#allocation11 + $0x68] sm:$0xff]
      %v399 = vld [vmem:[#allocation11 + $0x70] sm:$0xff]
      %v400 = vld [vmem:[#allocation11 + $0x78] sm:$0xff]
      %401 = vmatpush.msra.mxu0 %v400
      %402 = vmatpush.msra.mxu0 %v399
      %403 = vmatpush.msra.mxu0 %v398
      %404 = vmatpush.msra.mxu0 %v397
      %405 = vmatpush.msra.mxu0 %v396
      %406 = vmatpush.msra.mxu0 %v395
      %407 = vmatpush.msra.mxu0 %v394
      %408 = vmatpush.msra.mxu0 %v393
      %409 = vmatpush.msra.mxu0 %v392
      %410 = vmatpush.msra.mxu0 %v391
      %411 = vmatpush.msra.mxu0 %v390
      %412 = vmatpush.msra.mxu0 %v389
      %413 = vmatpush.msra.mxu0 %v388
      %414 = vmatpush.msra.mxu0 %v387
      %415 = vmatpush.msra.mxu0 %v386
      %416 = vmatpush.msra.mxu0 %v385
      %417 = vmatmul.f32.gmra.mxu0 %v300
      %v418 = vpop.f32.mrf.mxu0
      %v419 = vadd.f32 0.0, %v418
      %420 = vmatmul.f32.gmra.mxu0 %v303
      %v421 = vpop.f32.mrf.mxu0
      %v422 = vadd.f32 0.0, %v421
      %423 = vdwg.mxu0
      %v424 = vadd.f32 %v380, %v419
      %v425 = vadd.f32 %v383, %v422
      %v426 = vld [vmem:[%s8] sm:$0x1]
      %v428 = vperm.slane %v426, 0
      %v430 = vadd.f32 %v424, %v428
      %v431 = vadd.f32 %v425, %v428
      %v432 = vmax.f32 %v430, 0.0
      %v433 = vmax.f32 %v431, 0.0
      %v434 = vld [vmem:[#allocation12] sm:$0xff]
      %v435 = vld [vmem:[#allocation12 + $0x8] sm:$0xff]
      %v436 = vld [vmem:[#allocation12 + $0x10] sm:$0xff]
      %v437 = vld [vmem:[#allocation12 + $0x18] sm:$0xff]
      %v438 = vld [vmem:[#allocation12 + $0x20] sm:$0xff]
      %v439 = vld [vmem:[#allocation12 + $0x28] sm:$0xff]
      %v440 = vld [vmem:[#allocation12 + $0x30] sm:$0xff]
      %v441 = vld [vmem:[#allocation12 + $0x38] sm:$0xff]
      %v442 = vld [vmem:[#allocation12 + $0x40] sm:$0xff]
      %v443 = vld [vmem:[#allocation12 + $0x48] sm:$0xff]
      %v444 = vld [vmem:[#allocation12 + $0x50] sm:$0xff]
      %v445 = vld [vmem:[#allocation12 + $0x58] sm:$0xff]
      %v446 = vld [vmem:[#allocation12 + $0x60] sm:$0xff]
      %v447 = vld [vmem:[#allocation12 + $0x68] sm:$0xff]
      %v448 = vld [vmem:[#allocation12 + $0x70] sm:$0xff]
      %v449 = vld [vmem:[#allocation12 + $0x78] sm:$0xff]
      %v450 = vld [vmem:[%s10] sm:$0x1]
      %v452 = vperm.slane %v450, 0
      %454 = vmatpush.msra.mxu0 %v449
      %455 = vmatpush.msra.mxu0 %v448
      %456 = vmatpush.msra.mxu0 %v447
      %457 = vmatpush.msra.mxu0 %v446
      %458 = vmatpush.msra.mxu0 %v445
      %459 = vmatpush.msra.mxu0 %v444
      %460 = vmatpush.msra.mxu0 %v443
      %461 = vmatpush.msra.mxu0 %v442
      %462 = vmatpush.msra.mxu0 %v441
      %463 = vmatpush.msra.mxu0 %v440
      %464 = vmatpush.msra.mxu0 %v439
      %465 = vmatpush.msra.mxu0 %v438
      %466 = vmatpush.msra.mxu0 %v437
      %467 = vmatpush.msra.mxu0 %v436
      %468 = vmatpush.msra.mxu0 %v435
      %469 = vmatpush.msra.mxu0 %v434
      %470 = vmatmul.f32.gmra.mxu0 %v432
      %v471 = vpop.f32.mrf.mxu0
      %v472 = vadd.f32 %v452, %v471
      %473 = vmatmul.f32.gmra.mxu0 %v433
      %v474 = vpop.f32.mrf.mxu0
      %v475 = vadd.f32 %v452, %v474
      %476 = vdwg.mxu0
      %477 = vst [vmem:[#allocation14] sm:$0xff] %v472
      %478 = vst [vmem:[#allocation14 + $0x8] sm:$0xff] %v475
    $region77: #{tpu_custom_call.1} parent=1 // pred_fallthru
      _
    // Predicated region
    $region78: #{tpu_custom_call.1} parent=1 // pred_check
      _
    $region79: #{tpu_custom_call.1} parent=1 // pred_check_branch
      %480 = sbr.rel (0) target = $region81
    $region80: #{tpu_custom_call.1} parent=1 // pred_region
      %482 = vsyncadd [#allocation5], 0
      %s483 = sshll.u32 [#allocation14], 4
      %s484 = int_to_ptr.vmem [resolvable:$true] %s483
      %s485 = sshll.u32 %s11, 4
      %s486 = int_to_ptr.hbm [resolvable:$true] %s485
      %491 = dma.vmem_to_hbm [thread:$0]  %s484, 256, %s486, [#allocation5], 128, 128, 8
    $region81: #{tpu_custom_call.1} parent=1 // pred_fallthru
      _
    // Predicated region
    $region82: #{tpu_custom_call.1} parent=1 // pred_check
      _
    $region83: #{tpu_custom_call.1} parent=1 // pred_check_branch
      %493 = sbr.rel (0) target = $region85
    $region84: #{tpu_custom_call.1} parent=1 // pred_region
      %495 = dma.done [#allocation5], 256
    $region85: #{tpu_custom_call.1} parent=1 // pred_fallthru
      _
    %496 = vsyncpa [#allocation4], 1
    %497 = vsyncpa [#allocation7], 1
    %498 = vsyncpa [#allocation10], 1
    %499 = vsyncpa [#allocation13], 1
    %500 = vsyncpa [#allocation5], 1

</llo_original>
